<compile_context>
chip_gen: v7x
topology: tpu7x:2x2x1
jax: 0.10.0
libtpu: 0.0.40
codegen_flags: <defaults>
</compile_context>

<pallas_src>
import numpy as np
import jax
import jax.numpy as jnp
from jax.experimental import pallas as pl
from jax.experimental.pallas import tpu as pltpu

SIGMOID_SLOPE_PROB = 5.0
SIGMOID_SLOPE_SAMPLING = 200.0   # only shapes KMaxSoftmaxFunction.backward
CENTER_REGION = 10               # norm_prob() default center_region
K_CENTER_REGION = 10             # config.k_center_region (weight init only)
INITIAL_R = 4.0


def _outside_center_mask(H, W, cr=CENTER_REGION):
    """1.0 outside the calibration box, 0.0 inside, flattened to (1, H*W).

    Faithful to the torch indexing in norm_2d_probability: the row (dim-0)
    slice is built from W//2 ("center_bb_y") and the col (dim-1) slice from
    H//2 ("center_bb_x").  Identical for square images.
    """
    m = np.ones((H, W), dtype=np.float32)
    m[W // 2 - cr // 2: W // 2 + cr // 2,
      H // 2 - cr // 2: H // 2 + cr // 2] = 0.0
    return m.reshape(1, H * W)


def _vmem_info():
    """(tile budget bytes, physical VMEM capacity bytes) — generation aware."""
    try:
        cap = int(pltpu.get_tpu_info().vmem_capacity_bytes)
    except Exception:
        cap = 64 << 20          # conservative fallback: v7x physical VMEM
    return int(cap * 0.6), cap


def _block_bytes(tb, tc, HW, item):
    """VMEM bytes for one grid step: double-buffered pipelined blocks plus the
    resident lambda-mask scratch."""
    return (6 * tb * tc * HW * item      # omega + lam + inv blocks, 2 bufs each
            + 2 * tb * HW * 4            # noise block (f32), 2 bufs
            + 4 * HW * 4                 # weights + outside (f32), 2 bufs
            + tb * HW * item)            # lam_mask scratch


def _pick_tiles(B, C, coil, HW, item, budget_bytes):
    """Largest (batch tile, coil tile) block that fits the budget.

    tc must be a multiple of 8 or the full coil (Mosaic second-minor-dim
    constraint); tb may be any divisor of B (it is not in the last two dims of
    any block).  Falls back to batch tiling instead of ignoring the budget.
    """
    coil_tiles = sorted({coil} | {t for t in range(8, coil, 8) if coil % t == 0},
                        reverse=True)
    batch_tiles = [d for d in range(B, 0, -1) if B % d == 0]
    best = None
    for tb in batch_tiles:
        for tc in coil_tiles:
            if _block_bytes(tb, tc, HW, item) <= budget_bytes:
                cand = (tb * tc, tb, tc)
                if best is None or cand > best:
                    best = cand
    if best is None:
        # Nothing fits even at the smallest legal block; run anyway with the
        # explicit vmem limit raised to cover it.
        # TODO(synk): extremely large per-(b, coil-tile) images would need an
        # additional H*W split.
        tb, tc = 1, min(coil_tiles)
    else:
        _, tb, tc = best
    # v7x shards the parallel grid axes over 2 TensorCores: guarantee at
    # least 2 parallel steps when the shapes allow it.
    if C * (B // tb) < 2 and B >= 2:
        tb = max(d for d in range(1, B) if B % d == 0)
    return tb, tc


def _partition_kernel(r_ref, w_ref, outside_ref, noise_ref, omega_ref,
                      lam_ref, inv_ref, mask_ref):
    """Grid = (batch-tile b, contrast c, coil-tile k).  The lambda mask only
    depends on (b, c), so it is computed once at k == 0 and reused."""
    c = pl.program_id(1)
    k = pl.program_id(2)

    @pl.when(k == 0)
    def _():
        HW = w_ref.shape[-1]
        hw = float(HW)
        cr2 = float(CENTER_REGION * CENTER_REGION)

        # --- get_norm_probability() ---------------------------------------
        outside = outside_ref[...]                                # (1, HW) f32
        prob = jax.nn.sigmoid(w_ref[...] * SIGMOID_SLOPE_PROB) * outside
        psum = jnp.sum(prob, axis=(0, 1), keepdims=True)          # (1, 1)

        # --- norm_2d_probability() (is_learn_R=False), exact scalar math ---
        R = r_ref[c]                                               # SMEM scalar
        prob_total = hw / R - cr2
        inv_total = jnp.maximum(hw * (1.0 - 1.0 / R), 0.0)
        inv_sum = hw - psum - cr2
        cond = psum > prob_total
        down_scale = prob_total / psum          # exact division (scalar)
        up_scale = inv_total / inv_sum          # exact division (scalar)
        # Branch as a scalar select folded into one pass over (1, HW):
        #   cond : prob * down_scale
        #  !cond : 1 - (1 - prob) * up_scale = prob * up_scale + (1 - up_scale)
        s = jnp.where(cond, down_scale, up_scale)
        o = jnp.where(cond, 0.0, 1.0 - up_scale)
        norm_prob = (prob * s + o) * outside + (1.0 - outside)     # center -> 1

        # --- get_mask(): KMaxSoftmaxFunction forward = hard threshold ------
        # TODO(synk): the straight-through sigmoid backward (slope 200) is not
        # reproduced; forward semantics are the binary 0/1 mask.
        mask_ref[...] = (norm_prob >= noise_ref[...]).astype(mask_ref.dtype)

    # --- split_into_lambda_loss_sets(): broadcast mask over coils ----------
    omega = omega_ref[...]                                         # (tb, tc, HW)
    lam = omega * mask_ref[...]                                    # (tb, 1, HW) bcast
    lam_ref[...] = lam
    inv_ref[...] = omega - lam          # exact for a binary mask


def learn_partitioning_forward(initial_mask, noise, sampling_weights, r_values):
    B, C, coil, H, W = initial_mask.shape
    HW = H * W
    dtype = initial_mask.dtype
    item = dtype.itemsize

    # Lane-dense views: free reshapes only, no wrapper-side transposes.
    omega_r = initial_mask.reshape(B, C, coil, HW)
    noise_r = noise.reshape(B, C, 1, HW).astype(jnp.float32)
    weights_r = sampling_weights.reshape(C, 1, HW).astype(jnp.float32)
    outside = jnp.asarray(_outside_center_mask(H, W))              # (1, HW)
    r_values = r_values.astype(jnp.float32)

    budget, cap = _vmem_info()
    tb, tc = _pick_tiles(B, C, coil, HW, item, budget)
    n_b, n_k = B // tb, coil // tc
    need = _block_bytes(tb, tc, HW, item)
    vmem_limit = int(min(cap - (4 << 20), max(need + (8 << 20), 32 << 20)))

    big = B * C * coil * HW
    cost = pl.CostEstimate(
        flops=int(3 * big + 16 * n_b * C * HW),
        transcendentals=int(n_b * C * HW),
        bytes_accessed=int(3 * big * item + B * C * HW * 4 + (C + 1) * HW * 4))

    out_sds = jax.ShapeDtypeStruct((B, C, coil, HW), dtype)

    lam_r, inv_r = pl.pallas_call(
        _partition_kernel,
        out_shape=(out_sds, out_sds),
        grid_spec=pltpu.PrefetchScalarGridSpec(
            num_scalar_prefetch=1,                 # r_values -> SMEM
            grid=(n_b, C, n_k),
            in_specs=[
                # per-contrast sampling weights, (1, HW) in-kernel
                pl.BlockSpec((None, 1, HW), lambda b, c, k, r: (c, 0, 0)),
                # static outside-center mask, resident for the whole grid
                pl.BlockSpec((1, HW), lambda b, c, k, r: (0, 0)),
                # per-(batch-tile, contrast) noise, (tb, 1, HW) in-kernel
                pl.BlockSpec((tb, None, 1, HW), lambda b, c, k, r: (b, c, 0, 0)),
                # omega / acquisition mask, (tb, tc, HW) in-kernel
                pl.BlockSpec((tb, None, tc, HW), lambda b, c, k, r: (b, c, k, 0)),
            ],
            out_specs=(
                pl.BlockSpec((tb, None, tc, HW), lambda b, c, k, r: (b, c, k, 0)),
                pl.BlockSpec((tb, None, tc, HW), lambda b, c, k, r: (b, c, k, 0)),
            ),
            scratch_shapes=[pltpu.VMEM((tb, 1, HW), dtype)],       # lambda mask
        ),
        compiler_params=pltpu.CompilerParams(
            dimension_semantics=("parallel", "parallel", "arbitrary"),
            vmem_limit_bytes=vmem_limit),
        cost_estimate=cost,
    )(r_values, weights_r, outside, noise_r, omega_r)

    return (lam_r.reshape(B, C, coil, H, W),
            inv_r.reshape(B, C, coil, H, W))


def build_params(C, H, W):
    """Deterministic parameter init (mirrors _setup_sampling_weights /
    _setup_R_values with is_warm_start=False, is_learn_R=False)."""
    # TODO(synk): is_warm_start=True path needs gen_pdf_bern (external helper).
    init_prob = np.full((C, H, W), 0.5, dtype=np.float32)
    kc = K_CENTER_REGION
    init_prob[:, H // 2 - kc // 2:H // 2 + kc // 2,
                 W // 2 - kc // 2:W // 2 + kc // 2] = 0.99
    sampling_weights = (-np.log(1.0 / init_prob - 1.0) /
                        SIGMOID_SLOPE_PROB).astype(np.float32)
    r_values = np.full((C,), INITIAL_R, dtype=np.float32)
    return jnp.asarray(sampling_weights), jnp.asarray(r_values)


if __name__ == "__main__":
    B, C, coil, H, W = 2, 2, 4, 32, 32

    key = jax.random.PRNGKey(0)
    k_mask, k_noise = jax.random.split(key)

    # omega / initial acquisition mask: binary values, carried as bfloat16
    # (exact for 0/1, halves the HBM bytes of the three large arrays).
    initial_mask = (jax.random.uniform(k_mask, (B, C, coil, H, W))
                    < 0.5).astype(jnp.bfloat16)
    # the torch.rand(...) drawn inside forward() is passed in explicitly here
    noise = jax.random.uniform(k_noise, (B, C, H, W), dtype=jnp.float32)

    sampling_weights, r_values = build_params(C, H, W)

    lambda_set, inverse_set = learn_partitioning_forward(
        initial_mask, noise, sampling_weights, r_values)
    jax.block_until_ready((lambda_set, inverse_set))

    # sanity: disjoint split must reassemble omega exactly (mask is binary)
    total = lambda_set.astype(jnp.float32) + inverse_set.astype(jnp.float32)
    assert bool(jnp.all(total == initial_mask.astype(jnp.float32)))
    assert bool(jnp.all((lambda_set >= 0) & (lambda_set <= 1)))
    print("KERNEL_OK")
</pallas_src>

<mosaic_0001>
module attributes {stable_mosaic.version = 11 : i64} {
  func.func @_partition_kernel(%arg0: i32, %arg1: i32, %arg2: i32, %arg3: memref<2xf32, #tpu.memory_space<smem>>, %arg4: memref<1x1x1024xf32, #tpu.memory_space<vmem>>, %arg5: memref<1x1024xf32, #tpu.memory_space<vmem>>, %arg6: memref<2x1x1x1024xf32, #tpu.memory_space<vmem>>, %arg7: memref<2x1x4x1024xbf16, #tpu.memory_space<vmem>>, %arg8: memref<2x1x4x1024xbf16, #tpu.memory_space<vmem>>, %arg9: memref<2x1x4x1024xbf16, #tpu.memory_space<vmem>>, %arg10: memref<2x1x1024xbf16, #tpu.memory_space<vmem>>) attributes {dimension_semantics = [#tpu.dimension_semantics<parallel>, #tpu.dimension_semantics<parallel>, #tpu.dimension_semantics<arbitrary>], iteration_bounds = array<i64: 1, 2, 1>, scalar_prefetch = 1 : i64, scratch_operands = 1 : i64, tpu.core_type = #tpu.core_type<tc>, window_params = [{transform_indices = @transform_0, window_bounds = array<i64: 1, 1, 1024>}, {pipeline_mode = #tpu.pipeline_mode<synchronous>, transform_indices = @transform_1, window_bounds = array<i64: 1, 1024>}, {transform_indices = @transform_2, window_bounds = array<i64: 2, 1, 1, 1024>}, {transform_indices = @transform_3, window_bounds = array<i64: 2, 1, 4, 1024>}, {transform_indices = @transform_4, window_bounds = array<i64: 2, 1, 4, 1024>}, {transform_indices = @transform_5, window_bounds = array<i64: 2, 1, 4, 1024>}]} {
    %c0_i32 = arith.constant 0 : i32
    %0 = arith.cmpi eq, %arg2, %c0_i32 : i32
    %1 = arith.extui %0 : i1 to i32
    %c0_i32_0 = arith.constant 0 : i32
    %2 = arith.cmpi ne, %1, %c0_i32_0 : i32
    scf.if %2 {
      %c0_15 = arith.constant 0 : index
      %c0_16 = arith.constant 0 : index
      %15 = vector.load %arg5[%c0_15, %c0_16] : memref<1x1024xf32, #tpu.memory_space<vmem>>, vector<1x1024xf32>
      %c0_17 = arith.constant 0 : index
      %c0_18 = arith.constant 0 : index
      %c0_19 = arith.constant 0 : index
      %16 = vector.load %arg4[%c0_17, %c0_18, %c0_19] : memref<1x1x1024xf32, #tpu.memory_space<vmem>>, vector<1x1x1024xf32>
      %17 = vector.shape_cast %16 : vector<1x1x1024xf32> to vector<1x1024xf32>
      %cst = arith.constant 5.000000e+00 : f32
      %18 = vector.broadcast %cst : f32 to vector<1x1024xf32>
      %19 = arith.mulf %17, %18 : vector<1x1024xf32>
      %20 = arith.negf %19 : vector<1x1024xf32>
      %21 = math.exp %20 : vector<1x1024xf32>
      %cst_20 = arith.constant 1.000000e+00 : f32
      %22 = vector.broadcast %cst_20 : f32 to vector<1x1024xf32>
      %23 = arith.addf %22, %21 : vector<1x1024xf32>
      %24 = arith.divf %22, %23 : vector<1x1024xf32>
      %25 = arith.mulf %24, %15 : vector<1x1024xf32>
      %26 = vector.shape_cast %25 : vector<1x1024xf32> to vector<1x1x1024xf32>
      %cst_21 = arith.constant dense<0.000000e+00> : vector<1xf32>
      %27 = vector.multi_reduction <add>, %26, %cst_21 [1, 2] : vector<1x1x1024xf32> to vector<1xf32>
      %28 = vector.shape_cast %27 : vector<1xf32> to vector<1x1x1xf32>
      %29 = vector.extract %28[0, 0, 0] : f32 from vector<1x1x1xf32>
      %30 = vector.broadcast %29 : f32 to vector<1x1xf32>
      %31 = arith.index_cast %arg1 : i32 to index
      %32 = memref.load %arg3[%31] : memref<2xf32, #tpu.memory_space<smem>>
      %cst_22 = arith.constant 1.024000e+03 : f32
      %33 = arith.divf %cst_22, %32 : f32
      %cst_23 = arith.constant 1.000000e+02 : f32
      %34 = arith.subf %33, %cst_23 : f32
      %cst_24 = arith.constant 1.000000e+00 : f32
      %35 = arith.divf %cst_24, %32 : f32
      %cst_25 = arith.constant 1.000000e+00 : f32
      %36 = arith.subf %cst_25, %35 : f32
      %cst_26 = arith.constant 1.024000e+03 : f32
      %37 = arith.mulf %cst_26, %36 : f32
      %cst_27 = arith.constant 0.000000e+00 : f32
      %38 = arith.maximumf %37, %cst_27 : f32
      %cst_28 = arith.constant 1.024000e+03 : f32
      %39 = vector.broadcast %cst_28 : f32 to vector<1x1xf32>
      %40 = arith.subf %39, %30 : vector<1x1xf32>
      %cst_29 = arith.constant 1.000000e+02 : f32
      %41 = vector.broadcast %cst_29 : f32 to vector<1x1xf32>
      %42 = arith.subf %40, %41 : vector<1x1xf32>
      %43 = vector.broadcast %34 : f32 to vector<1x1xf32>
      %44 = arith.cmpf ogt, %30, %43 : vector<1x1xf32>
      %45 = vector.broadcast %34 : f32 to vector<1x1xf32>
      %46 = arith.divf %45, %30 : vector<1x1xf32>
      %47 = vector.broadcast %38 : f32 to vector<1x1xf32>
      %48 = arith.divf %47, %42 : vector<1x1xf32>
      %49 = arith.select %44, %46, %48 : vector<1x1xi1>, vector<1x1xf32>
      %cst_30 = arith.constant 1.000000e+00 : f32
      %50 = vector.broadcast %cst_30 : f32 to vector<1x1xf32>
      %51 = arith.subf %50, %48 : vector<1x1xf32>
      %cst_31 = arith.constant 0.000000e+00 : f32
      %52 = vector.broadcast %cst_31 : f32 to vector<1x1xf32>
      %53 = arith.select %44, %52, %51 : vector<1x1xi1>, vector<1x1xf32>
      %54 = vector.broadcast %49 : vector<1x1xf32> to vector<1x1024xf32>
      %55 = arith.mulf %25, %54 : vector<1x1024xf32>
      %56 = vector.broadcast %53 : vector<1x1xf32> to vector<1x1024xf32>
      %57 = arith.addf %55, %56 : vector<1x1024xf32>
      %58 = arith.mulf %57, %15 : vector<1x1024xf32>
      %cst_32 = arith.constant 1.000000e+00 : f32
      %59 = vector.broadcast %cst_32 : f32 to vector<1x1024xf32>
      %60 = arith.subf %59, %15 : vector<1x1024xf32>
      %61 = arith.addf %58, %60 : vector<1x1024xf32>
      %c0_33 = arith.constant 0 : index
      %c0_34 = arith.constant 0 : index
      %c0_35 = arith.constant 0 : index
      %c0_36 = arith.constant 0 : index
      %62 = vector.load %arg6[%c0_33, %c0_34, %c0_35, %c0_36] : memref<2x1x1x1024xf32, #tpu.memory_space<vmem>>, vector<2x1x1x1024xf32>
      %63 = vector.shape_cast %62 : vector<2x1x1x1024xf32> to vector<2x1x1024xf32>
      %64 = vector.shape_cast %61 : vector<1x1024xf32> to vector<1x1x1024xf32>
      %65 = vector.broadcast %64 : vector<1x1x1024xf32> to vector<2x1x1024xf32>
      %66 = arith.cmpf oge, %65, %63 : vector<2x1x1024xf32>
      %67 = arith.extui %66 : vector<2x1x1024xi1> to vector<2x1x1024xi32>
      %68 = arith.sitofp %67 : vector<2x1x1024xi32> to vector<2x1x1024xf32>
      %69 = arith.truncf %68 : vector<2x1x1024xf32> to vector<2x1x1024xbf16>
      %c0_37 = arith.constant 0 : index
      %c0_38 = arith.constant 0 : index
      %c0_39 = arith.constant 0 : index
      %70 = vector.load %arg10[%c0_37, %c0_38, %c0_39] : memref<2x1x1024xbf16, #tpu.memory_space<vmem>>, vector<2x1x1024xbf16>
      tpu.vector_store %arg10[%c0_37, %c0_38, %c0_39], %69 {strides = array<i32>} : memref<2x1x1024xbf16, #tpu.memory_space<vmem>>, vector<2x1x1024xbf16>,
    } else {
    }
    %c0 = arith.constant 0 : index
    %c0_1 = arith.constant 0 : index
    %c0_2 = arith.constant 0 : index
    %c0_3 = arith.constant 0 : index
    %3 = vector.load %arg7[%c0, %c0_1, %c0_2, %c0_3] : memref<2x1x4x1024xbf16, #tpu.memory_space<vmem>>, vector<2x1x4x1024xbf16>
    %4 = vector.shape_cast %3 : vector<2x1x4x1024xbf16> to vector<2x4x1024xbf16>
    %c0_4 = arith.constant 0 : index
    %c0_5 = arith.constant 0 : index
    %c0_6 = arith.constant 0 : index
    %5 = vector.load %arg10[%c0_4, %c0_5, %c0_6] : memref<2x1x1024xbf16, #tpu.memory_space<vmem>>, vector<2x1x1024xbf16>
    %6 = vector.broadcast %5 : vector<2x1x1024xbf16> to vector<2x4x1024xbf16>
    %7 = arith.mulf %4, %6 : vector<2x4x1024xbf16>
    %c0_7 = arith.constant 0 : index
    %c0_8 = arith.constant 0 : index
    %c0_9 = arith.constant 0 : index
    %c0_10 = arith.constant 0 : index
    %8 = vector.load %arg8[%c0_7, %c0_8, %c0_9, %c0_10] : memref<2x1x4x1024xbf16, #tpu.memory_space<vmem>>, vector<2x1x4x1024xbf16>
    %9 = vector.shape_cast %8 : vector<2x1x4x1024xbf16> to vector<2x4x1024xbf16>
    %10 = vector.shape_cast %7 : vector<2x4x1024xbf16> to vector<2x1x4x1024xbf16>
    tpu.vector_store %arg8[%c0_7, %c0_8, %c0_9, %c0_10], %10 {strides = array<i32>} : memref<2x1x4x1024xbf16, #tpu.memory_space<vmem>>, vector<2x1x4x1024xbf16>,
    %11 = arith.subf %4, %7 : vector<2x4x1024xbf16>
    %c0_11 = arith.constant 0 : index
    %c0_12 = arith.constant 0 : index
    %c0_13 = arith.constant 0 : index
    %c0_14 = arith.constant 0 : index
    %12 = vector.load %arg9[%c0_11, %c0_12, %c0_13, %c0_14] : memref<2x1x4x1024xbf16, #tpu.memory_space<vmem>>, vector<2x1x4x1024xbf16>
    %13 = vector.shape_cast %12 : vector<2x1x4x1024xbf16> to vector<2x4x1024xbf16>
    %14 = vector.shape_cast %11 : vector<2x4x1024xbf16> to vector<2x1x4x1024xbf16>
    tpu.vector_store %arg9[%c0_11, %c0_12, %c0_13, %c0_14], %14 {strides = array<i32>} : memref<2x1x4x1024xbf16, #tpu.memory_space<vmem>>, vector<2x1x4x1024xbf16>,
    return
  }
  func.func @transform_0(%arg0: i32, %arg1: i32, %arg2: i32, %arg3: memref<2xf32, #tpu.memory_space<smem>>) -> (i32, i32, i32) {
    %c0_i32 = arith.constant 0 : i32
    %c0_i32_0 = arith.constant 0 : i32
    %c0_i32_1 = arith.constant 0 : i32
    return %arg1, %c0_i32, %c0_i32_0 : i32, i32, i32
  }
  func.func @transform_1(%arg0: i32, %arg1: i32, %arg2: i32, %arg3: memref<2xf32, #tpu.memory_space<smem>>) -> (i32, i32) {
    %c0_i32 = arith.constant 0 : i32
    %c0_i32_0 = arith.constant 0 : i32
    %c0_i32_1 = arith.constant 0 : i32
    return %c0_i32, %c0_i32_0 : i32, i32
  }
  func.func @transform_2(%arg0: i32, %arg1: i32, %arg2: i32, %arg3: memref<2xf32, #tpu.memory_space<smem>>) -> (i32, i32, i32, i32) {
    %c0_i32 = arith.constant 0 : i32
    %c0_i32_0 = arith.constant 0 : i32
    %c0_i32_1 = arith.constant 0 : i32
    return %arg0, %arg1, %c0_i32, %c0_i32_0 : i32, i32, i32, i32
  }
  func.func @transform_3(%arg0: i32, %arg1: i32, %arg2: i32, %arg3: memref<2xf32, #tpu.memory_space<smem>>) -> (i32, i32, i32, i32) {
    %c0_i32 = arith.constant 0 : i32
    %c0_i32_0 = arith.constant 0 : i32
    return %arg0, %arg1, %arg2, %c0_i32 : i32, i32, i32, i32
  }
  func.func @transform_4(%arg0: i32, %arg1: i32, %arg2: i32, %arg3: memref<2xf32, #tpu.memory_space<smem>>) -> (i32, i32, i32, i32) {
    %c0_i32 = arith.constant 0 : i32
    %c0_i32_0 = arith.constant 0 : i32
    return %arg0, %arg1, %arg2, %c0_i32 : i32, i32, i32, i32
  }
  func.func @transform_5(%arg0: i32, %arg1: i32, %arg2: i32, %arg3: memref<2xf32, #tpu.memory_space<smem>>) -> (i32, i32, i32, i32) {
    %c0_i32 = arith.constant 0 : i32
    %c0_i32_0 = arith.constant 0 : i32
    return %arg0, %arg1, %arg2, %c0_i32 : i32, i32, i32, i32
  }
}

</mosaic_0001>

<llo_original>
// kernel: tpu_custom_call.1
$region0: #{tpu_custom_call.1}
  #allocation0 [shape = 'u32[]', space=smem, size = 0x4, offset = 0x4, fixed_abs, tag = 'smem constant byte address 0x4 - core index']
  #allocation1 [shape = 'u32[144,128]{1,0:T(1,128)}', space=vmem, size = 0x12000, scoped, tag = 'internal scratch']
  #allocation2 [shape = 'bf16[2,1,1024]{2,1,0:T(2,128)(2,1)}', space=vmem, size = 0x2000, scoped, tag = 'scratch operand']
  #allocation3 [shape = 's32[1]{0}', space=sflag, size = 0x4, scoped, tag = 'scoped memory for tpu_custom_call.1']
  #allocation4 [shape = 'u8[512]{0}', space=smem, size = 0x200, scoped, tag = 'prefetched SMEM operand 0']
  %s0 = inlined_call_operand.hbm [shape: f32[2], index: 0, kind: input, shape index: {}]
  %s1 = inlined_call_operand.hbm [shape: f32[2,1,1024], index: 1, kind: input, shape index: {}]
  %s2 = inlined_call_operand.hbm [shape: f32[1,1024], index: 2, kind: input, shape index: {}]
  %s3 = inlined_call_operand.hbm [shape: f32[2,2,1,1024], index: 3, kind: input, shape index: {}]
  %s4 = inlined_call_operand.hbm [shape: bf16[2,2,4,1024], index: 4, kind: input, shape index: {}]
  %s5 = inlined_call_operand.hbm [shape: bf16[2,2,4,1024], index: 5, kind: output, shape index: {0}]
  %s6 = inlined_call_operand.hbm [shape: bf16[2,2,4,1024], index: 6, kind: output, shape index: {1}]
  %7 = xla_tuple %s5, %s6
  %s8 = sld [smem:[#allocation0]]
  $region77: #{tpu_custom_call.1} parent=0
    _
  %s10 = ssub.s32 1, %s8
  %s11 = scalar_select 0, %s10, %s8
  %13 = dma.hbm_to_smem %s0, 16, [#allocation4], [#allocation3]
  %14 = dma.done [#allocation3], 16
  %15 = sfence
  $region1: #{tpu_custom_call.1} parent=0
    #allocation5 [shape = 'u8[8192]{0}', space=vmem, size = 0x2000, scoped, tag = 'input window, operand 1']
    #allocation6 [shape = 's32[2]{0}', space=sflag, size = 0x8, scoped, tag = 'scoped memory for tpu_custom_call.1']
    #allocation7 [shape = 's32[2]{0}', space=sflag, size = 0x8, scoped, tag = 'scoped memory for tpu_custom_call.1']
    #allocation8 [shape = 'u8[4096]{0}', space=vmem, size = 0x1000, scoped, tag = 'input window, operand 2, single buffered']
    #allocation9 [shape = 's32[1]{0}', space=sflag, size = 0x4, scoped, tag = 'scoped memory for tpu_custom_call.1']
    #allocation10 [shape = 'u8[16384]{0}', space=vmem, size = 0x4000, scoped, tag = 'input window, operand 3']
    #allocation11 [shape = 'u8[32768]{0}', space=vmem, size = 0x8000, scoped, tag = 'input window, operand 4']
    #allocation12 [shape = 'u8[32768]{0}', space=vmem, size = 0x8000, scoped, tag = 'output window, operand 0']
    #allocation13 [shape = 'u8[32768]{0}', space=vmem, size = 0x8000, scoped, tag = 'output window, operand 1']
    #allocation14 [shape = 's32[2]{0}', space=sflag, size = 0x8, scoped, tag = 'scoped memory for tpu_custom_call.1']
    %16 = vsyncpa [#allocation6], 0
    %s17 = scalar_lea.sflag [#allocation6], 1
    %18 = vsyncpa %s17, 0
    %19 = vsyncpa [#allocation9], 0
    %20 = vsyncpa [#allocation7], 0
    %s21 = scalar_lea.sflag [#allocation7], 1
    %22 = vsyncpa %s21, 0
    %23 = vsyncpa [#allocation14], 0
    %s24 = scalar_lea.sflag [#allocation14], 1
    %25 = vsyncpa %s24, 0
    loop: start=0, step=1, limit=4
    $region2: #{tpu_custom_call.1} parent=1 // loop_pre_header
      _
    $region3: #{tpu_custom_call.1} parent=1 // loop_header
      %s27 = sphi 0, %s31
      %p28 = scmp.ge.s32.totalorder %s27, 4
      %s34 = sphi 0, %s53
      %s35 = sphi 0, %s49
      %s36 = sphi 0, %s45
      %s37 = sphi 0, %s34
      %s38 = sphi 0, %s35
      %s39 = sphi 0, %s36
      %s40 = sphi 0, %s37
      %s41 = sphi 0, %s38
      %s42 = sphi 0, %s39
      %s56 = sphi 0, %s58
      %s59 = sphi 0, %s56
      %s60 = sphi 0, %s59
      %s76 = sphi 0, %s60
      %s80 = sphi 0, %s80
      %s82 = sphi 0, %s80
      %s83 = sphi 0, %s82
      %s97 = sphi 0, %s83
      %s105 = sphi 0, %s107
      %s108 = sphi 0, %s105
      %s109 = sphi 0, %s108
      %s125 = sphi 0, %s109
      %s135 = sphi 0, %s137
      %s138 = sphi 0, %s135
      %s139 = sphi 0, %s138
      %s155 = sphi 0, %s139
      %s165 = sphi 0, %s167
      %s168 = sphi 0, %s165
      %s169 = sphi 0, %s168
      %s185 = sphi 0, %s169
      %s195 = sphi 0, %s197
      %s198 = sphi 0, %s195
      %s199 = sphi 0, %s198
      %s215 = sphi 0, %s199
    $region4: #{tpu_custom_call.1} parent=1 // loop_header_branch
      %30 = sbr.rel (%p28) target = $region8
    $region5: #{tpu_custom_call.1} parent=1 // loop_body
      %s32 = ssub.s32 %s27, 1
      %s33 = ssub.s32 %s27, 2
      %s43 = sadd.s32 1, %s36
      %p44 = scmp.ge.s32.totalorder %s43, 1
      %s45 = scalar_select %p44, 0, %s43
      %s46 = sadd.s32 1, %s35
      %s47 = scalar_select %p44, %s46, %s35
      %p48 = scmp.ge.s32.totalorder %s47, 2
      %s49 = scalar_select %p48, 0, %s47
      %s50 = sadd.s32 1, %s34
      %s51 = scalar_select %p48, %s50, %s34
      %p52 = scmp.ge.s32.totalorder %s51, 1
      %s53 = scalar_select %p52, 0, %s51
      %s54 = ssub.s32 %s35, %s49
      %p55 = scmp.eq.s32.totalorder %s54, 0
      %s57 = sadd.s32 %s56, 1
      %s58 = scalar_select %p55, %s56, %s57
      %p61 = pneg %p55
      %p62 = scmp.eq.s32.totalorder %s27, 1
      %p63 = por %p61, %p62
      %p64 = scmp.ne.s32.totalorder %s56, %s59
      %p65 = scmp.eq.s32.totalorder %s27, 0
      %p66 = por %p64, %p65
      %p67 = scmp.ne.s32.totalorder %s56, %s59
      %p68 = scmp.eq.s32.totalorder %s32, 1
      %p69 = por %p67, %p68
      %p70 = scmp.ne.s32.totalorder %s59, %s60
      %p71 = scmp.eq.s32.totalorder %s32, 0
      %p72 = por %p70, %p71
      %p73 = scmp.ne.s32.totalorder %s59, %s60
      %p74 = scmp.eq.s32.totalorder %s33, 1
      %p75 = por %p73, %p74
      %p77 = scmp.ne.s32.totalorder %s60, %s76
      %p78 = scmp.eq.s32.totalorder %s33, 0
      %p79 = por %p77, %p78
      %s81 = sadd.s32 %s80, 1
      %p84 = scmp.eq.s32.totalorder %s27, 1
      %p85 = scmp.ne.s32.totalorder %s80, %s82
      %p86 = scmp.eq.s32.totalorder %s27, 0
      %p87 = por %p85, %p86
      %p88 = scmp.ne.s32.totalorder %s80, %s82
      %p89 = scmp.eq.s32.totalorder %s32, 1
      %p90 = por %p88, %p89
      %p91 = scmp.ne.s32.totalorder %s82, %s83
      %p92 = scmp.eq.s32.totalorder %s32, 0
      %p93 = por %p91, %p92
      %p94 = scmp.ne.s32.totalorder %s82, %s83
      %p95 = scmp.eq.s32.totalorder %s33, 1
      %p96 = por %p94, %p95
      %p98 = scmp.ne.s32.totalorder %s83, %s97
      %p99 = scmp.eq.s32.totalorder %s33, 0
      %p100 = por %p98, %p99
      %s101 = ssub.s32 %s34, %s53
      %s102 = ssub.s32 %s35, %s49
      %s103 = sor.u32 %s101, %s102
      %p104 = scmp.eq.s32.totalorder %s103, 0
      %s106 = sadd.s32 %s105, 1
      %s107 = scalar_select %p104, %s105, %s106
      %p110 = pneg %p104
      %p111 = scmp.eq.s32.totalorder %s27, 1
      %p112 = por %p110, %p111
      %p113 = scmp.ne.s32.totalorder %s105, %s108
      %p114 = scmp.eq.s32.totalorder %s27, 0
      %p115 = por %p113, %p114
      %p116 = scmp.ne.s32.totalorder %s105, %s108
      %p117 = scmp.eq.s32.totalorder %s32, 1
      %p118 = por %p116, %p117
      %p119 = scmp.ne.s32.totalorder %s108, %s109
      %p120 = scmp.eq.s32.totalorder %s32, 0
      %p121 = por %p119, %p120
      %p122 = scmp.ne.s32.totalorder %s108, %s109
      %p123 = scmp.eq.s32.totalorder %s33, 1
      %p124 = por %p122, %p123
      %p126 = scmp.ne.s32.totalorder %s109, %s125
      %p127 = scmp.eq.s32.totalorder %s33, 0
      %p128 = por %p126, %p127
      %s129 = ssub.s32 %s34, %s53
      %s130 = ssub.s32 %s35, %s49
      %s131 = sor.u32 %s129, %s130
      %s132 = ssub.s32 %s36, %s45
      %s133 = sor.u32 %s131, %s132
      %p134 = scmp.eq.s32.totalorder %s133, 0
      %s136 = sadd.s32 %s135, 1
      %s137 = scalar_select %p134, %s135, %s136
      %p140 = pneg %p134
      %p141 = scmp.eq.s32.totalorder %s27, 1
      %p142 = por %p140, %p141
      %p143 = scmp.ne.s32.totalorder %s135, %s138
      %p144 = scmp.eq.s32.totalorder %s27, 0
      %p145 = por %p143, %p144
      %p146 = scmp.ne.s32.totalorder %s135, %s138
      %p147 = scmp.eq.s32.totalorder %s32, 1
      %p148 = por %p146, %p147
      %p149 = scmp.ne.s32.totalorder %s138, %s139
      %p150 = scmp.eq.s32.totalorder %s32, 0
      %p151 = por %p149, %p150
      %p152 = scmp.ne.s32.totalorder %s138, %s139
      %p153 = scmp.eq.s32.totalorder %s33, 1
      %p154 = por %p152, %p153
      %p156 = scmp.ne.s32.totalorder %s139, %s155
      %p157 = scmp.eq.s32.totalorder %s33, 0
      %p158 = por %p156, %p157
      %s159 = ssub.s32 %s34, %s53
      %s160 = ssub.s32 %s35, %s49
      %s161 = sor.u32 %s159, %s160
      %s162 = ssub.s32 %s36, %s45
      %s163 = sor.u32 %s161, %s162
      %p164 = scmp.eq.s32.totalorder %s163, 0
      %s166 = sadd.s32 %s165, 1
      %s167 = scalar_select %p164, %s165, %s166
      %p170 = pneg %p164
      %p171 = scmp.eq.s32.totalorder %s27, 1
      %p172 = por %p170, %p171
      %p173 = scmp.ne.s32.totalorder %s165, %s168
      %p174 = scmp.eq.s32.totalorder %s27, 0
      %p175 = por %p173, %p174
      %p176 = scmp.ne.s32.totalorder %s165, %s168
      %p177 = scmp.eq.s32.totalorder %s32, 1
      %p178 = por %p176, %p177
      %p179 = scmp.ne.s32.totalorder %s168, %s169
      %p180 = scmp.eq.s32.totalorder %s32, 0
      %p181 = por %p179, %p180
      %p182 = scmp.ne.s32.totalorder %s168, %s169
      %p183 = scmp.eq.s32.totalorder %s33, 1
      %p184 = por %p182, %p183
      %p186 = scmp.ne.s32.totalorder %s169, %s185
      %p187 = scmp.eq.s32.totalorder %s33, 0
      %p188 = por %p186, %p187
      %s189 = ssub.s32 %s34, %s53
      %s190 = ssub.s32 %s35, %s49
      %s191 = sor.u32 %s189, %s190
      %s192 = ssub.s32 %s36, %s45
      %s193 = sor.u32 %s191, %s192
      %p194 = scmp.eq.s32.totalorder %s193, 0
      %s196 = sadd.s32 %s195, 1
      %s197 = scalar_select %p194, %s195, %s196
      %p200 = pneg %p194
      %p201 = scmp.eq.s32.totalorder %s27, 1
      %p202 = por %p200, %p201
      %p203 = scmp.ne.s32.totalorder %s195, %s198
      %p204 = scmp.eq.s32.totalorder %s27, 0
      %p205 = por %p203, %p204
      %p206 = scmp.ne.s32.totalorder %s195, %s198
      %p207 = scmp.eq.s32.totalorder %s32, 1
      %p208 = por %p206, %p207
      %p209 = scmp.ne.s32.totalorder %s198, %s199
      %p210 = scmp.eq.s32.totalorder %s32, 0
      %p211 = por %p209, %p210
      %p212 = scmp.ne.s32.totalorder %s198, %s199
      %p213 = scmp.eq.s32.totalorder %s33, 1
      %p214 = por %p212, %p213
      %p216 = scmp.ne.s32.totalorder %s199, %s215
      %p217 = scmp.eq.s32.totalorder %s33, 0
      %p218 = por %p216, %p217
      %p219 = scmp.le.s32.totalorder 1, %s27
      %p220 = scmp.lt.s32.totalorder %s27, 3
      %p221 = pnand %p219, %p220
      %p222 = pneg %p221
      // Predicated region
      $region9: #{tpu_custom_call.1} parent=5 // pred_check
        _
      $region10: #{tpu_custom_call.1} parent=5 // pred_check_branch
        %224 = sbr.rel (%p221) target = $region12
      $region11: #{tpu_custom_call.1} parent=5 // pred_region
        %s225 = ssub.s32 %s27, 1
        // Predicated region
        $region13: #{tpu_custom_call.1} parent=11 // pred_check
          %p226 = pneg %p93
        $region14: #{tpu_custom_call.1} parent=11 // pred_check_branch
          %228 = sbr.rel (%p226) target = $region16
        $region15: #{tpu_custom_call.1} parent=11 // pred_region
          %s230 = ssub.s32 128, 128
          %231 = vsyncadd [#allocation9], %s230
          %s233 = sshll.u32 [#allocation8], 4
          %s234 = int_to_ptr.vmem [resolvable:$true] %s233
          %236 = dma.hbm_to_vmem [thread:$0]  %s2, 128, %s234, [#allocation9]
        $region16: #{tpu_custom_call.1} parent=11 // pred_fallthru
          _
      $region12: #{tpu_custom_call.1} parent=5 // pred_fallthru
        _
      %p237 = scmp.lt.s32.totalorder %s27, 2
      // Predicated region
      $region17: #{tpu_custom_call.1} parent=5 // pred_check
        %p238 = pneg %p237
      $region18: #{tpu_custom_call.1} parent=5 // pred_check_branch
        %240 = sbr.rel (%p238) target = $region20
      $region19: #{tpu_custom_call.1} parent=5 // pred_region
        // Predicated region
        $region21: #{tpu_custom_call.1} parent=19 // pred_check
          %p241 = pneg %p66
        $region22: #{tpu_custom_call.1} parent=19 // pred_check_branch
          %243 = sbr.rel (%p241) target = $region24
        $region23: #{tpu_custom_call.1} parent=19 // pred_region
          %s244 = sand.u32 %s27, 1
          %s245 = scalar_lea.sflag [#allocation6], %s244
          %s246 = sand.u32 %s56, 1
          %s247 = smul.addr %s246, 8
          %s248 = scalar_lea.vmem [#allocation5], %s247
          %s250 = ssub.s32 128, 128
          %251 = vsyncadd %s245, %s250
          %s252 = smul.addr %s35, 8
          %s253 = smul.addr %s252, 16
          %s254 = scalar_lea.hbm %s1, %s253
          %s256 = sshll.u32 %s248, 4
          %s257 = int_to_ptr.vmem [resolvable:$true] %s256
          %259 = dma.hbm_to_vmem [thread:$0]  %s254, 128, %s257, %s245
        $region24: #{tpu_custom_call.1} parent=19 // pred_fallthru
          _
        // Predicated region
        $region25: #{tpu_custom_call.1} parent=19 // pred_check
          %p260 = pneg %p115
        $region26: #{tpu_custom_call.1} parent=19 // pred_check_branch
          %262 = sbr.rel (%p260) target = $region28
        $region27: #{tpu_custom_call.1} parent=19 // pred_region
          %s263 = sand.u32 %s27, 1
          %s264 = scalar_lea.sflag [#allocation6], %s263
          %s265 = sand.u32 %s105, 1
          %s266 = smul.addr %s265, 16
          %s267 = scalar_lea.vmem [#allocation10], %s266
          %s268 = smul.u32 2, %s34
          %s270 = ssub.s32 256, 256
          %271 = vsyncadd %s264, %s270
          %s272 = smul.addr %s35, 8
          %s273 = smul.addr %s268, 16
          %s274 = sadd.s32 %s272, %s273
          %s275 = smul.addr %s274, 16
          %s276 = scalar_lea.hbm %s3, %s275
          %s277 = sshll.u32 %s267, 4
          %s278 = int_to_ptr.vmem [resolvable:$true] %s277
          %283 = dma.hbm_to_vmem [thread:$0]  %s276, 256, %s278, %s264, 256, 128, 8
        $region28: #{tpu_custom_call.1} parent=19 // pred_fallthru
          _
        // Predicated region
        $region29: #{tpu_custom_call.1} parent=19 // pred_check
          %p284 = pneg %p145
        $region30: #{tpu_custom_call.1} parent=19 // pred_check_branch
          %286 = sbr.rel (%p284) target = $region32
        $region31: #{tpu_custom_call.1} parent=19 // pred_region
          %s287 = sand.u32 %s27, 1
          %s288 = scalar_lea.sflag [#allocation6], %s287
          %s289 = sand.u32 %s135, 1
          %s290 = smul.addr %s289, 32
          %s291 = scalar_lea.vmem [#allocation11], %s290
          %s292 = smul.u32 2, %s34
          %s294 = ssub.s32 512, 512
          %295 = vsyncadd %s288, %s294
          %s296 = smul.addr %s36, 8
          %s297 = smul.addr %s35, 8
          %s298 = sadd.s32 %s296, %s297
          %s299 = smul.addr %s292, 16
          %s300 = sadd.s32 %s298, %s299
          %s301 = smul.addr %s300, 32
          %s302 = scalar_lea.hbm %s4, %s301
          %s303 = sshll.u32 %s291, 4
          %s304 = int_to_ptr.vmem [resolvable:$true] %s303
          %309 = dma.hbm_to_vmem [thread:$0]  %s302, 512, %s304, %s288, 512, 256, 16
        $region32: #{tpu_custom_call.1} parent=19 // pred_fallthru
          _
      $region20: #{tpu_custom_call.1} parent=5 // pred_fallthru
        _
      %p310 = scmp.le.s32.totalorder 1, %s27
      %p311 = scmp.lt.s32.totalorder %s27, 3
      %p312 = pnand %p310, %p311
      %p313 = pneg %p312
      // Predicated region
      $region33: #{tpu_custom_call.1} parent=5 // pred_check
        _
      $region34: #{tpu_custom_call.1} parent=5 // pred_check_branch
        %315 = sbr.rel (%p312) target = $region36
      $region35: #{tpu_custom_call.1} parent=5 // pred_region
        %s316 = ssub.s32 %s27, 1
        %s317 = sand.u32 %s32, 1
        %s318 = scalar_lea.sflag [#allocation6], %s317
        %s319 = sand.u32 %s59, 1
        %s320 = smul.addr %s319, 8
        %s321 = scalar_lea.vmem [#allocation5], %s320
        // Predicated region
        $region37: #{tpu_custom_call.1} parent=35 // pred_check
          %p322 = pneg %p72
        $region38: #{tpu_custom_call.1} parent=35 // pred_check_branch
          %324 = sbr.rel (%p322) target = $region40
        $region39: #{tpu_custom_call.1} parent=35 // pred_region
          %325 = dma.done %s318, 128
        $region40: #{tpu_custom_call.1} parent=35 // pred_fallthru
          _
        // Predicated region
        $region41: #{tpu_custom_call.1} parent=35 // pred_check
          %p326 = pneg %p93
        $region42: #{tpu_custom_call.1} parent=35 // pred_check_branch
          %328 = sbr.rel (%p326) target = $region44
        $region43: #{tpu_custom_call.1} parent=35 // pred_region
          %329 = dma.done [#allocation9], 128
        $region44: #{tpu_custom_call.1} parent=35 // pred_fallthru
          _
        %s330 = sand.u32 %s32, 1
        %s331 = scalar_lea.sflag [#allocation6], %s330
        %s332 = sand.u32 %s108, 1
        %s333 = smul.addr %s332, 16
        %s334 = scalar_lea.vmem [#allocation10], %s333
        // Predicated region
        $region45: #{tpu_custom_call.1} parent=35 // pred_check
          %p335 = pneg %p121
        $region46: #{tpu_custom_call.1} parent=35 // pred_check_branch
          %337 = sbr.rel (%p335) target = $region48
        $region47: #{tpu_custom_call.1} parent=35 // pred_region
          %338 = dma.done %s331, 256
        $region48: #{tpu_custom_call.1} parent=35 // pred_fallthru
          _
        %s339 = sand.u32 %s32, 1
        %s340 = scalar_lea.sflag [#allocation6], %s339
        %s341 = sand.u32 %s138, 1
        %s342 = smul.addr %s341, 32
        %s343 = scalar_lea.vmem [#allocation11], %s342
        // Predicated region
        $region49: #{tpu_custom_call.1} parent=35 // pred_check
          %p344 = pneg %p151
        $region50: #{tpu_custom_call.1} parent=35 // pred_check_branch
          %346 = sbr.rel (%p344) target = $region52
        $region51: #{tpu_custom_call.1} parent=35 // pred_region
          %347 = dma.done %s340, 512
        $region52: #{tpu_custom_call.1} parent=35 // pred_fallthru
          _
        %s348 = sand.u32 %s32, 1
        %s349 = scalar_lea.sflag [#allocation6], %s348
        %s350 = sand.u32 %s59, 1
        %s351 = smul.addr %s350, 8
        %s352 = scalar_lea.vmem [#allocation5], %s351
        %p353 = pneg %p72
        %p354 = pneg %p69
        %p355 = pneg %p93
        %p356 = pneg %p90
        %s357 = sand.u32 %s32, 1
        %s358 = scalar_lea.sflag [#allocation6], %s357
        %s359 = sand.u32 %s108, 1
        %s360 = smul.addr %s359, 16
        %s361 = scalar_lea.vmem [#allocation10], %s360
        %p362 = pneg %p121
        %p363 = pneg %p118
        %s364 = sand.u32 %s32, 1
        %s365 = scalar_lea.sflag [#allocation6], %s364
        %s366 = sand.u32 %s138, 1
        %s367 = smul.addr %s366, 32
        %s368 = scalar_lea.vmem [#allocation11], %s367
        %p369 = pneg %p151
        %p370 = pneg %p148
        %p371 = pneg %p181
        %p372 = pneg %p178
        %s373 = sand.u32 %s168, 1
        %s374 = scalar_lea.sflag [#allocation7], %s373
        %s375 = sand.u32 %s168, 1
        %s376 = smul.addr %s375, 32
        %s377 = scalar_lea.vmem [#allocation12], %s376
        %p378 = pneg %p211
        %p379 = pneg %p208
        %s380 = sand.u32 %s198, 1
        %s381 = scalar_lea.sflag [#allocation14], %s380
        %s382 = sand.u32 %s198, 1
        %s383 = smul.addr %s382, 32
        %s384 = scalar_lea.vmem [#allocation13], %s383
        %s385 = smul.u32 2, %s37
        %s386 = smul.u32 2, %s37
        %s387 = smul.u32 2, %s37
        %s388 = smul.u32 2, %s37
        %p389 = scmp.eq.s32.totalorder %s39, 0
        // Predicated region
        $region53: #{tpu_custom_call.1} parent=35 // pred_check
          %p390 = pneg %p389
        $region54: #{tpu_custom_call.1} parent=35 // pred_check_branch
          %392 = sbr.rel (%p390) target = $region56
        $region55: #{tpu_custom_call.1} parent=35 // pred_region
          %v393 = vld [vmem:[#allocation8] sm:$0xff]
          %v394 = vld [vmem:[%s321] sm:$0xff]
          %v395 = vmul.f32 %v394, 5.0
          %v396 = vxor.u32 %v395, 2147483648
          %v397 = vmul.f32 %v396, 1.442695
          %v398 = vpow.pop %v397
          %v399 = vadd.f32 %v398, 1.0
          %v400 = vrcp.pop %v399
          %v401 = vmul.f32 1.0, %v400
          %v402 = vmul.f32 %v401, %v393
          %v404 = vlaneseq
          %v405 = vshrl.u32 %v404, 7
          %v406 = vsub.s32 0, %v405
          %v407 = vrot.slane %v402, %v406
          %v408 = vlaneseq
          %v409 = vshrl.u32 %v408, 7
          %v410 = vsub.s32 1, %v409
          %v411 = vrot.slane %v402, %v410
          %v412 = vlaneseq
          %v413 = vshrl.u32 %v412, 7
          %v414 = vsub.s32 2, %v413
          %v415 = vrot.slane %v402, %v414
          %v416 = vlaneseq
          %v417 = vshrl.u32 %v416, 7
          %v418 = vsub.s32 3, %v417
          %v419 = vrot.slane %v402, %v418
          %v420 = vlaneseq
          %v421 = vshrl.u32 %v420, 7
          %v422 = vsub.s32 4, %v421
          %v423 = vrot.slane %v402, %v422
          %v424 = vlaneseq
          %v425 = vshrl.u32 %v424, 7
          %v426 = vsub.s32 5, %v425
          %v427 = vrot.slane %v402, %v426
          %v428 = vlaneseq
          %v429 = vshrl.u32 %v428, 7
          %v430 = vsub.s32 6, %v429
          %v431 = vrot.slane %v402, %v430
          %v432 = vlaneseq
          %v433 = vshrl.u32 %v432, 7
          %v434 = vsub.s32 7, %v433
          %v435 = vrot.slane %v402, %v434
          %vm444 = vcmask 1040384
          %v445 = vsel %vm444, %v407, 0.0
          %v446 = vsel %vm444, %v411, 0.0
          %v447 = vadd.f32 %v445, %v446
          %v448 = vsel %vm444, %v415, 0.0
          %v449 = vadd.f32 %v447, %v448
          %v450 = vsel %vm444, %v419, 0.0
          %v451 = vadd.f32 %v449, %v450
          %v452 = vsel %vm444, %v423, 0.0
          %v453 = vadd.f32 %v451, %v452
          %v454 = vsel %vm444, %v427, 0.0
          %v455 = vadd.f32 %v453, %v454
          %v456 = vsel %vm444, %v431, 0.0
          %v457 = vadd.f32 %v455, %v456
          %v458 = vsel %vm444, %v435, 0.0
          %v459 = vadd.f32 %v457, %v458
          %460 = vadd.xlane.f32.xlu0 %v459
          %v461 = vpop.xlane.xlu0 %460
          %v462 = vrot.slane %v461, 4
          %v463 = vadd.f32 %v461, %v462
          %v464 = vrot.slane %v463, 2
          %v465 = vadd.f32 %v463, %v464
          %v466 = vrot.slane %v465, 1
          %v467 = vadd.f32 %v465, %v466
          %s468 = vtos %v467
          %v469 = vstv %s468
          %s470 = sld [smem:[#allocation4 + %s38]]
          %v471 = vstv %s470
          %v472 = vrcp.pop %v471
          %s473 = vtos %v472
          %s474 = smul.f32 1024.0, %s473
          %s475 = ssub.f32 %s474, 100.0
          %v476 = vstv %s470
          %v477 = vrcp.pop %v476
          %s478 = vtos %v477
          %s479 = ssub.f32 1.0, %s478
          %s480 = smul.f32 %s479, 1024.0
          %s481 = smax.f32 %s480, 0.0
          %v482 = vsub.f32 1024.0, %v469
          %v483 = vsub.f32 %v482, 100.0
          %v484 = vstv %s475
          %vm485 = vcmp.gt.f32.partialorder %v469, %v484
          %v486 = vrcp.pop %v469
          %v487 = vmul.f32 %v484, %v486
          %v488 = vstv %s481
          %v489 = vrcp.pop %v483
          %v490 = vmul.f32 %v488, %v489
          %v491 = vsel %vm485, %v487, %v490
          %v492 = vsub.f32 1.0, %v490
          %v493 = vsel %vm485, 0.0, %v492
          %v494 = vmul.f32 %v402, %v491
          %v495 = vadd.f32 %v494, %v493
          %v496 = vmul.f32 %v495, %v393
          %v497 = vsub.f32 1.0, %v393
          %v498 = vadd.f32 %v496, %v497
          %v499 = vld [vmem:[%s334] sm:$0xff]
          %v500 = vld [vmem:[%s334 + $0x8] sm:$0xff]
          %vm501 = vcmp.ge.f32.partialorder %v498, %v499
          %vm502 = vcmp.ge.f32.partialorder %v498, %v500
          %v503 = vsel %vm501, 1, 0
          %v504 = vsel %vm502, 1, 0
          %v505 = vcvt.s32.f32 %v503
          %v506 = vcvt.s32.f32 %v504
          %v509 = vlaneseq
          %v510 = vshrl.u32 %v509, 7
          %v511 = vsub.s32 0, %v510
          %v512 = vrot.slane %v505, %v511
          %v513 = vlaneseq
          %v514 = vshrl.u32 %v513, 7
          %v515 = vsub.s32 1, %v514
          %v516 = vrot.slane %v505, %v515
          %v517 = vlaneseq
          %v518 = vshrl.u32 %v517, 7
          %v519 = vsub.s32 2, %v518
          %v520 = vrot.slane %v505, %v519
          %v521 = vlaneseq
          %v522 = vshrl.u32 %v521, 7
          %v523 = vsub.s32 3, %v522
          %v524 = vrot.slane %v505, %v523
          %v525 = vlaneseq
          %v526 = vshrl.u32 %v525, 7
          %v527 = vsub.s32 4, %v526
          %v528 = vrot.slane %v505, %v527
          %v529 = vlaneseq
          %v530 = vshrl.u32 %v529, 7
          %v531 = vsub.s32 5, %v530
          %v532 = vrot.slane %v505, %v531
          %v533 = vlaneseq
          %v534 = vshrl.u32 %v533, 7
          %v535 = vsub.s32 6, %v534
          %v536 = vrot.slane %v505, %v535
          %v537 = vlaneseq
          %v538 = vshrl.u32 %v537, 7
          %v539 = vsub.s32 7, %v538
          %v540 = vrot.slane %v505, %v539
          %v541 = vlaneseq
          %v542 = vshrl.u32 %v541, 7
          %v543 = vsub.s32 0, %v542
          %v544 = vrot.slane %v506, %v543
          %v545 = vlaneseq
          %v546 = vshrl.u32 %v545, 7
          %v547 = vsub.s32 1, %v546
          %v548 = vrot.slane %v506, %v547
          %v549 = vlaneseq
          %v550 = vshrl.u32 %v549, 7
          %v551 = vsub.s32 2, %v550
          %v552 = vrot.slane %v506, %v551
          %v553 = vlaneseq
          %v554 = vshrl.u32 %v553, 7
          %v555 = vsub.s32 3, %v554
          %v556 = vrot.slane %v506, %v555
          %v557 = vlaneseq
          %v558 = vshrl.u32 %v557, 7
          %v559 = vsub.s32 4, %v558
          %v560 = vrot.slane %v506, %v559
          %v561 = vlaneseq
          %v562 = vshrl.u32 %v561, 7
          %v563 = vsub.s32 5, %v562
          %v564 = vrot.slane %v506, %v563
          %v565 = vlaneseq
          %v566 = vshrl.u32 %v565, 7
          %v567 = vsub.s32 6, %v566
          %v568 = vrot.slane %v506, %v567
          %v569 = vlaneseq
          %v570 = vshrl.u32 %v569, 7
          %v571 = vsub.s32 7, %v570
          %v572 = vrot.slane %v506, %v571
          %v589 = vpack.c.bf16 %v512, %v512
          %v590 = vpack.c.bf16 %v516, %v516
          %v591 = vpack.c.bf16 %v520, %v520
          %v592 = vpack.c.bf16 %v524, %v524
          %v593 = vpack.c.bf16 %v528, %v528
          %v594 = vpack.c.bf16 %v532, %v532
          %v595 = vpack.c.bf16 %v536, %v536
          %v596 = vpack.c.bf16 %v540, %v540
          %v597 = vpack.c.bf16 %v544, %v544
          %v598 = vpack.c.bf16 %v548, %v548
          %v599 = vpack.c.bf16 %v552, %v552
          %v600 = vpack.c.bf16 %v556, %v556
          %v601 = vpack.c.bf16 %v560, %v560
          %v602 = vpack.c.bf16 %v564, %v564
          %v603 = vpack.c.bf16 %v568, %v568
          %v604 = vpack.c.bf16 %v572, %v572
          %v621 = vcombine.low %v589, %v590
          %v622 = vcombine.low %v591, %v592
          %v623 = vcombine.low %v593, %v594
          %v624 = vcombine.low %v595, %v596
          %v626 = vunpack.c.l.s4 1966171168
          %v627 = vunpack.c.0.s8 %v626
          %v628 = vlaneseq
          %v629 = vshrl.u32 %v628, 7
          %v630 = vsub.s32 %v627, %v629
          %v631 = vrot.slane %v621, %v630
          %v633 = vunpack.c.l.s4 1966171168
          %v634 = vunpack.c.0.s8 %v633
          %v635 = vlaneseq
          %v636 = vshrl.u32 %v635, 7
          %v637 = vsub.s32 %v634, %v636
          %v638 = vrot.slane %v622, %v637
          %v640 = vunpack.c.l.s4 1966171168
          %v641 = vunpack.c.0.s8 %v640
          %v642 = vlaneseq
          %v643 = vshrl.u32 %v642, 7
          %v644 = vsub.s32 %v641, %v643
          %v645 = vrot.slane %v623, %v644
          %v647 = vunpack.c.l.s4 1966171168
          %v648 = vunpack.c.0.s8 %v647
          %v649 = vlaneseq
          %v650 = vshrl.u32 %v649, 7
          %v651 = vsub.s32 %v648, %v650
          %v652 = vrot.slane %v624, %v651
          %v653 = vcombine.low %v631, %v638
          %v654 = vcombine.low %v645, %v652
          %v656 = vunpack.c.l.s4 1966171168
          %v657 = vunpack.c.0.s8 %v656
          %v658 = vlaneseq
          %v659 = vshrl.u32 %v658, 7
          %v660 = vsub.s32 %v657, %v659
          %v661 = vrot.slane %v653, %v660
          %v663 = vunpack.c.l.s4 1966171168
          %v664 = vunpack.c.0.s8 %v663
          %v665 = vlaneseq
          %v666 = vshrl.u32 %v665, 7
          %v667 = vsub.s32 %v664, %v666
          %v668 = vrot.slane %v654, %v667
          %v669 = vcombine.low %v661, %v668
          %v670 = vcombine.low %v597, %v598
          %v671 = vcombine.low %v599, %v600
          %v672 = vcombine.low %v601, %v602
          %v673 = vcombine.low %v603, %v604
          %v675 = vunpack.c.l.s4 1966171168
          %v676 = vunpack.c.0.s8 %v675
          %v677 = vlaneseq
          %v678 = vshrl.u32 %v677, 7
          %v679 = vsub.s32 %v676, %v678
          %v680 = vrot.slane %v670, %v679
          %v682 = vunpack.c.l.s4 1966171168
          %v683 = vunpack.c.0.s8 %v682
          %v684 = vlaneseq
          %v685 = vshrl.u32 %v684, 7
          %v686 = vsub.s32 %v683, %v685
          %v687 = vrot.slane %v671, %v686
          %v689 = vunpack.c.l.s4 1966171168
          %v690 = vunpack.c.0.s8 %v689
          %v691 = vlaneseq
          %v692 = vshrl.u32 %v691, 7
          %v693 = vsub.s32 %v690, %v692
          %v694 = vrot.slane %v672, %v693
          %v696 = vunpack.c.l.s4 1966171168
          %v697 = vunpack.c.0.s8 %v696
          %v698 = vlaneseq
          %v699 = vshrl.u32 %v698, 7
          %v700 = vsub.s32 %v697, %v699
          %v701 = vrot.slane %v673, %v700
          %v702 = vcombine.low %v680, %v687
          %v703 = vcombine.low %v694, %v701
          %v705 = vunpack.c.l.s4 1966171168
          %v706 = vunpack.c.0.s8 %v705
          %v707 = vlaneseq
          %v708 = vshrl.u32 %v707, 7
          %v709 = vsub.s32 %v706, %v708
          %v710 = vrot.slane %v702, %v709
          %v712 = vunpack.c.l.s4 1966171168
          %v713 = vunpack.c.0.s8 %v712
          %v714 = vlaneseq
          %v715 = vshrl.u32 %v714, 7
          %v716 = vsub.s32 %v713, %v715
          %v717 = vrot.slane %v703, %v716
          %v718 = vcombine.low %v710, %v717
          %vm721 = vcmask 1040384
          %vm722 = vsmask.f32 256
          %vm723 = vmand %vm721, %vm722
          %vm724 = vcmask 1041409
          %vm725 = vsmask.f32 1280
          %vm726 = vmand %vm724, %vm725
          %vm727 = vmor %vm726, %vm723
          %vm728 = vcmask 1042434
          %vm729 = vsmask.f32 2304
          %vm730 = vmand %vm728, %vm729
          %vm731 = vmor %vm730, %vm727
          %vm732 = vcmask 1043459
          %vm733 = vsmask.f32 3328
          %vm734 = vmand %vm732, %vm733
          %vm735 = vmor %vm734, %vm731
          %vm736 = vcmask 1044484
          %vm737 = vsmask.f32 4352
          %vm738 = vmand %vm736, %vm737
          %vm739 = vmor %vm738, %vm735
          %vm740 = vcmask 1045509
          %vm741 = vsmask.f32 5376
          %vm742 = vmand %vm740, %vm741
          %vm743 = vmor %vm742, %vm739
          %vm744 = vcmask 1046534
          %vm745 = vsmask.f32 6400
          %vm746 = vmand %vm744, %vm745
          %vm747 = vmor %vm746, %vm743
          %vm748 = vcmask 1047559
          %vm749 = vsmask.f32 7424
          %vm750 = vmand %vm748, %vm749
          %vm751 = vmor %vm750, %vm747
          %v752 = vld [vmem:[#allocation2] sm:$0xff]
          %v753 = vsel %vm751, %v669, %v752
          %754 = vst [vmem:[#allocation2] sm:$0xff] %v753
          %v755 = vld [vmem:[#allocation2 + $0x8] sm:$0xff]
          %v756 = vsel %vm751, %v718, %v755
          %757 = vst [vmem:[#allocation2 + $0x8] sm:$0xff] %v756
        $region56: #{tpu_custom_call.1} parent=35 // pred_fallthru
          _
        %v758 = vld [vmem:[%s343] sm:$0xff]
        %v759 = vld [vmem:[%s343 + $0x8] sm:$0xff]
        %v760 = vld [vmem:[%s343 + $0x10] sm:$0xff]
        %v761 = vld [vmem:[%s343 + $0x18] sm:$0xff]
        %v762 = vld [vmem:[#allocation2] sm:$0xff]
        %v763 = vld [vmem:[#allocation2 + $0x8] sm:$0xff]
        %v766 = vcombine.high %v762, %v762
        %v768 = vunpack.c.l.s4 1966171168
        %v769 = vunpack.c.0.s8 %v768
        %v770 = vlaneseq
        %v771 = vshrl.u32 %v770, 7
        %v772 = vsub.s32 %v769, %v771
        %v773 = vrot.slane %v762, %v772
        %v775 = vunpack.c.l.s4 1966171168
        %v776 = vunpack.c.0.s8 %v775
        %v777 = vlaneseq
        %v778 = vshrl.u32 %v777, 7
        %v779 = vsub.s32 %v776, %v778
        %v780 = vrot.slane %v766, %v779
        %v781 = vcombine.high %v773, %v773
        %v782 = vcombine.high %v780, %v780
        %v784 = vunpack.c.l.s4 1966171168
        %v785 = vunpack.c.0.s8 %v784
        %v786 = vlaneseq
        %v787 = vshrl.u32 %v786, 7
        %v788 = vsub.s32 %v785, %v787
        %v789 = vrot.slane %v773, %v788
        %v791 = vunpack.c.l.s4 1966171168
        %v792 = vunpack.c.0.s8 %v791
        %v793 = vlaneseq
        %v794 = vshrl.u32 %v793, 7
        %v795 = vsub.s32 %v792, %v794
        %v796 = vrot.slane %v780, %v795
        %v798 = vunpack.c.l.s4 1966171168
        %v799 = vunpack.c.0.s8 %v798
        %v800 = vlaneseq
        %v801 = vshrl.u32 %v800, 7
        %v802 = vsub.s32 %v799, %v801
        %v803 = vrot.slane %v781, %v802
        %v805 = vunpack.c.l.s4 1966171168
        %v806 = vunpack.c.0.s8 %v805
        %v807 = vlaneseq
        %v808 = vshrl.u32 %v807, 7
        %v809 = vsub.s32 %v806, %v808
        %v810 = vrot.slane %v782, %v809
        %v811 = vcombine.high %v789, %v789
        %v812 = vcombine.high %v796, %v796
        %v813 = vcombine.high %v803, %v803
        %v814 = vcombine.high %v810, %v810
        %v815 = vcombine.high %v763, %v763
        %v817 = vunpack.c.l.s4 1966171168
        %v818 = vunpack.c.0.s8 %v817
        %v819 = vlaneseq
        %v820 = vshrl.u32 %v819, 7
        %v821 = vsub.s32 %v818, %v820
        %v822 = vrot.slane %v763, %v821
        %v824 = vunpack.c.l.s4 1966171168
        %v825 = vunpack.c.0.s8 %v824
        %v826 = vlaneseq
        %v827 = vshrl.u32 %v826, 7
        %v828 = vsub.s32 %v825, %v827
        %v829 = vrot.slane %v815, %v828
        %v830 = vcombine.high %v822, %v822
        %v831 = vcombine.high %v829, %v829
        %v833 = vunpack.c.l.s4 1966171168
        %v834 = vunpack.c.0.s8 %v833
        %v835 = vlaneseq
        %v836 = vshrl.u32 %v835, 7
        %v837 = vsub.s32 %v834, %v836
        %v838 = vrot.slane %v822, %v837
        %v840 = vunpack.c.l.s4 1966171168
        %v841 = vunpack.c.0.s8 %v840
        %v842 = vlaneseq
        %v843 = vshrl.u32 %v842, 7
        %v844 = vsub.s32 %v841, %v843
        %v845 = vrot.slane %v829, %v844
        %v847 = vunpack.c.l.s4 1966171168
        %v848 = vunpack.c.0.s8 %v847
        %v849 = vlaneseq
        %v850 = vshrl.u32 %v849, 7
        %v851 = vsub.s32 %v848, %v850
        %v852 = vrot.slane %v830, %v851
        %v854 = vunpack.c.l.s4 1966171168
        %v855 = vunpack.c.0.s8 %v854
        %v856 = vlaneseq
        %v857 = vshrl.u32 %v856, 7
        %v858 = vsub.s32 %v855, %v857
        %v859 = vrot.slane %v831, %v858
        %v860 = vcombine.high %v838, %v838
        %v861 = vcombine.high %v845, %v845
        %v862 = vcombine.high %v852, %v852
        %v863 = vcombine.high %v859, %v859
        %v865 = vpack.i.b16 %v789, %v789
        %v867 = vlaneseq
        %v868 = vshrl.u32 %v867, 7
        %v869 = vsub.s32 0, %v868
        %v870 = vrot.slane %v865, %v869
        %v872 = vpack.i.b16 %v803, %v803
        %v874 = vlaneseq
        %v875 = vshrl.u32 %v874, 7
        %v876 = vsub.s32 0, %v875
        %v877 = vrot.slane %v872, %v876
        %v879 = vpack.i.b16 %v811, %v811
        %v881 = vlaneseq
        %v882 = vshrl.u32 %v881, 7
        %v883 = vsub.s32 0, %v882
        %v884 = vrot.slane %v879, %v883
        %v886 = vpack.i.b16 %v813, %v813
        %v888 = vlaneseq
        %v889 = vshrl.u32 %v888, 7
        %v890 = vsub.s32 0, %v889
        %v891 = vrot.slane %v886, %v890
        %v893 = vpack.i.b16 %v796, %v796
        %v895 = vlaneseq
        %v896 = vshrl.u32 %v895, 7
        %v897 = vsub.s32 0, %v896
        %v898 = vrot.slane %v893, %v897
        %v900 = vpack.i.b16 %v810, %v810
        %v902 = vlaneseq
        %v903 = vshrl.u32 %v902, 7
        %v904 = vsub.s32 0, %v903
        %v905 = vrot.slane %v900, %v904
        %v907 = vpack.i.b16 %v812, %v812
        %v909 = vlaneseq
        %v910 = vshrl.u32 %v909, 7
        %v911 = vsub.s32 0, %v910
        %v912 = vrot.slane %v907, %v911
        %v914 = vpack.i.b16 %v814, %v814
        %v916 = vlaneseq
        %v917 = vshrl.u32 %v916, 7
        %v918 = vsub.s32 0, %v917
        %v919 = vrot.slane %v914, %v918
        %v921 = vpack.i.b16 %v838, %v838
        %v923 = vlaneseq
        %v924 = vshrl.u32 %v923, 7
        %v925 = vsub.s32 0, %v924
        %v926 = vrot.slane %v921, %v925
        %v928 = vpack.i.b16 %v852, %v852
        %v930 = vlaneseq
        %v931 = vshrl.u32 %v930, 7
        %v932 = vsub.s32 0, %v931
        %v933 = vrot.slane %v928, %v932
        %v935 = vpack.i.b16 %v860, %v860
        %v937 = vlaneseq
        %v938 = vshrl.u32 %v937, 7
        %v939 = vsub.s32 0, %v938
        %v940 = vrot.slane %v935, %v939
        %v942 = vpack.i.b16 %v862, %v862
        %v944 = vlaneseq
        %v945 = vshrl.u32 %v944, 7
        %v946 = vsub.s32 0, %v945
        %v947 = vrot.slane %v942, %v946
        %v949 = vpack.i.b16 %v845, %v845
        %v951 = vlaneseq
        %v952 = vshrl.u32 %v951, 7
        %v953 = vsub.s32 0, %v952
        %v954 = vrot.slane %v949, %v953
        %v956 = vpack.i.b16 %v859, %v859
        %v958 = vlaneseq
        %v959 = vshrl.u32 %v958, 7
        %v960 = vsub.s32 0, %v959
        %v961 = vrot.slane %v956, %v960
        %v963 = vpack.i.b16 %v861, %v861
        %v965 = vlaneseq
        %v966 = vshrl.u32 %v965, 7
        %v967 = vsub.s32 0, %v966
        %v968 = vrot.slane %v963, %v967
        %v970 = vpack.i.b16 %v863, %v863
        %v972 = vlaneseq
        %v973 = vshrl.u32 %v972, 7
        %v974 = vsub.s32 0, %v973
        %v975 = vrot.slane %v970, %v974
        %v992 = vcombine.low %v870, %v877
        %v993 = vcombine.low %v884, %v891
        %v995 = vunpack.c.l.s4 1983009808
        %v996 = vunpack.c.0.s8 %v995
        %v997 = vlaneseq
        %v998 = vshrl.u32 %v997, 7
        %v999 = vsub.s32 %v996, %v998
        %v1000 = vrot.slane %v992, %v999
        %v1002 = vunpack.c.l.s4 1983009808
        %v1003 = vunpack.c.0.s8 %v1002
        %v1004 = vlaneseq
        %v1005 = vshrl.u32 %v1004, 7
        %v1006 = vsub.s32 %v1003, %v1005
        %v1007 = vrot.slane %v993, %v1006
        %v1008 = vcombine.low %v1000, %v1007
        %v1009 = vcombine.low %v898, %v905
        %v1010 = vcombine.low %v912, %v919
        %v1012 = vunpack.c.l.s4 1983009808
        %v1013 = vunpack.c.0.s8 %v1012
        %v1014 = vlaneseq
        %v1015 = vshrl.u32 %v1014, 7
        %v1016 = vsub.s32 %v1013, %v1015
        %v1017 = vrot.slane %v1009, %v1016
        %v1019 = vunpack.c.l.s4 1983009808
        %v1020 = vunpack.c.0.s8 %v1019
        %v1021 = vlaneseq
        %v1022 = vshrl.u32 %v1021, 7
        %v1023 = vsub.s32 %v1020, %v1022
        %v1024 = vrot.slane %v1010, %v1023
        %v1025 = vcombine.low %v1017, %v1024
        %v1026 = vcombine.low %v926, %v933
        %v1027 = vcombine.low %v940, %v947
        %v1029 = vunpack.c.l.s4 1983009808
        %v1030 = vunpack.c.0.s8 %v1029
        %v1031 = vlaneseq
        %v1032 = vshrl.u32 %v1031, 7
        %v1033 = vsub.s32 %v1030, %v1032
        %v1034 = vrot.slane %v1026, %v1033
        %v1036 = vunpack.c.l.s4 1983009808
        %v1037 = vunpack.c.0.s8 %v1036
        %v1038 = vlaneseq
        %v1039 = vshrl.u32 %v1038, 7
        %v1040 = vsub.s32 %v1037, %v1039
        %v1041 = vrot.slane %v1027, %v1040
        %v1042 = vcombine.low %v1034, %v1041
        %v1043 = vcombine.low %v954, %v961
        %v1044 = vcombine.low %v968, %v975
        %v1046 = vunpack.c.l.s4 1983009808
        %v1047 = vunpack.c.0.s8 %v1046
        %v1048 = vlaneseq
        %v1049 = vshrl.u32 %v1048, 7
        %v1050 = vsub.s32 %v1047, %v1049
        %v1051 = vrot.slane %v1043, %v1050
        %v1053 = vunpack.c.l.s4 1983009808
        %v1054 = vunpack.c.0.s8 %v1053
        %v1055 = vlaneseq
        %v1056 = vshrl.u32 %v1055, 7
        %v1057 = vsub.s32 %v1054, %v1056
        %v1058 = vrot.slane %v1044, %v1057
        %v1059 = vcombine.low %v1051, %v1058
        %v1064 = vmul.bf16 %v758, %v1008
        %v1065 = vmul.bf16 %v759, %v1025
        %v1066 = vmul.bf16 %v760, %v1042
        %v1067 = vmul.bf16 %v761, %v1059
        %1068 = vst [vmem:[%s377] sm:$0xff] %v1064
        %1069 = vst [vmem:[%s377 + $0x8] sm:$0xff] %v1065
        %1070 = vst [vmem:[%s377 + $0x10] sm:$0xff] %v1066
        %1071 = vst [vmem:[%s377 + $0x18] sm:$0xff] %v1067
        %v1072 = vsub.bf16 %v758, %v1064
        %v1073 = vsub.bf16 %v759, %v1065
        %v1074 = vsub.bf16 %v760, %v1066
        %v1075 = vsub.bf16 %v761, %v1067
        %1076 = vst [vmem:[%s384] sm:$0xff] %v1072
        %1077 = vst [vmem:[%s384 + $0x8] sm:$0xff] %v1073
        %1078 = vst [vmem:[%s384 + $0x10] sm:$0xff] %v1074
        %1079 = vst [vmem:[%s384 + $0x18] sm:$0xff] %v1075
        %s1080 = sand.u32 %s168, 1
        %s1081 = scalar_lea.sflag [#allocation7], %s1080
        %s1082 = sand.u32 %s168, 1
        %s1083 = smul.addr %s1082, 32
        %s1084 = scalar_lea.vmem [#allocation12], %s1083
        %s1085 = sand.u32 %s198, 1
        %s1086 = scalar_lea.sflag [#allocation14], %s1085
        %s1087 = sand.u32 %s198, 1
        %s1088 = smul.addr %s1087, 32
        %s1089 = scalar_lea.vmem [#allocation13], %s1088
        // Predicated region
        $region57: #{tpu_custom_call.1} parent=35 // pred_check
          %p1090 = pneg %p178
        $region58: #{tpu_custom_call.1} parent=35 // pred_check_branch
          %1092 = sbr.rel (%p1090) target = $region60
        $region59: #{tpu_custom_call.1} parent=35 // pred_region
          %s1093 = smul.u32 2, %s37
          %s1095 = ssub.s32 512, 512
          %1096 = vsyncadd %s1081, %s1095
          %s1097 = smul.addr %s39, 8
          %s1098 = smul.addr %s38, 8
          %s1099 = sadd.s32 %s1097, %s1098
          %s1100 = smul.addr %s1093, 16
          %s1101 = sadd.s32 %s1099, %s1100
          %s1102 = smul.addr %s1101, 32
          %s1103 = scalar_lea.hbm %s5, %s1102
          %s1104 = sshll.u32 %s1084, 4
          %s1105 = int_to_ptr.vmem [resolvable:$true] %s1104
          %1110 = dma.vmem_to_hbm [thread:$0]  %s1105, 512, %s1103, %s1081, 256, 512, 16
        $region60: #{tpu_custom_call.1} parent=35 // pred_fallthru
          _
        // Predicated region
        $region61: #{tpu_custom_call.1} parent=35 // pred_check
          %p1111 = pneg %p208
        $region62: #{tpu_custom_call.1} parent=35 // pred_check_branch
          %1113 = sbr.rel (%p1111) target = $region64
        $region63: #{tpu_custom_call.1} parent=35 // pred_region
          %s1114 = smul.u32 2, %s37
          %s1116 = ssub.s32 512, 512
          %1117 = vsyncadd %s1086, %s1116
          %s1118 = smul.addr %s39, 8
          %s1119 = smul.addr %s38, 8
          %s1120 = sadd.s32 %s1118, %s1119
          %s1121 = smul.addr %s1114, 16
          %s1122 = sadd.s32 %s1120, %s1121
          %s1123 = smul.addr %s1122, 32
          %s1124 = scalar_lea.hbm %s6, %s1123
          %s1125 = sshll.u32 %s1089, 4
          %s1126 = int_to_ptr.vmem [resolvable:$true] %s1125
          %1131 = dma.vmem_to_hbm [thread:$0]  %s1126, 512, %s1124, %s1086, 256, 512, 16
        $region64: #{tpu_custom_call.1} parent=35 // pred_fallthru
          _
      $region36: #{tpu_custom_call.1} parent=5 // pred_fallthru
        _
      %p1132 = scmp.le.s32.totalorder 2, %s27
      // Predicated region
      $region65: #{tpu_custom_call.1} parent=5 // pred_check
        %p1133 = pneg %p1132
      $region66: #{tpu_custom_call.1} parent=5 // pred_check_branch
        %1135 = sbr.rel (%p1133) target = $region68
      $region67: #{tpu_custom_call.1} parent=5 // pred_region
        %s1136 = ssub.s32 %s27, 2
        // Predicated region
        $region69: #{tpu_custom_call.1} parent=67 // pred_check
          %p1137 = pneg %p184
        $region70: #{tpu_custom_call.1} parent=67 // pred_check_branch
          %1139 = sbr.rel (%p1137) target = $region72
        $region71: #{tpu_custom_call.1} parent=67 // pred_region
          %s1140 = sand.u32 %s169, 1
          %s1141 = scalar_lea.sflag [#allocation7], %s1140
          %s1142 = sand.u32 %s169, 1
          %s1143 = smul.addr %s1142, 32
          %s1144 = scalar_lea.vmem [#allocation12], %s1143
          %1145 = dma.done %s1141, 512
        $region72: #{tpu_custom_call.1} parent=67 // pred_fallthru
          _
        // Predicated region
        $region73: #{tpu_custom_call.1} parent=67 // pred_check
          %p1146 = pneg %p214
        $region74: #{tpu_custom_call.1} parent=67 // pred_check_branch
          %1148 = sbr.rel (%p1146) target = $region76
        $region75: #{tpu_custom_call.1} parent=67 // pred_region
          %s1149 = sand.u32 %s199, 1
          %s1150 = scalar_lea.sflag [#allocation14], %s1149
          %s1151 = sand.u32 %s199, 1
          %s1152 = smul.addr %s1151, 32
          %s1153 = scalar_lea.vmem [#allocation13], %s1152
          %1154 = dma.done %s1150, 512
        $region76: #{tpu_custom_call.1} parent=67 // pred_fallthru
          _
      $region68: #{tpu_custom_call.1} parent=5 // pred_fallthru
        _
    $region6: #{tpu_custom_call.1} parent=1 // loop_footer
      %s31 = sadd.s32 1, %s27
    $region7: #{tpu_custom_call.1} parent=1 // loop_footer_branch
      %26 = sbr.rel target = $region3
    $region8: #{tpu_custom_call.1} parent=1 // loop_exit
      _
    %1155 = vsyncpa [#allocation6], 1
    %s1156 = scalar_lea.sflag [#allocation6], 1
    %1157 = vsyncpa %s1156, 1
    %1158 = vsyncpa [#allocation9], 1
    %1159 = vsyncpa [#allocation7], 1
    %s1160 = scalar_lea.sflag [#allocation7], 1
    %1161 = vsyncpa %s1160, 1
    %1162 = vsyncpa [#allocation14], 1
    %s1163 = scalar_lea.sflag [#allocation14], 1
    %1164 = vsyncpa %s1163, 1

</llo_original>
